<compile_context>
chip_gen: v5e
topology: v5e:2x2
jax: 0.10.0
libtpu: 0.0.40
codegen_flags: <defaults>
</compile_context>

<pallas_src>
import jax
import jax.numpy as jnp
from jax.experimental import pallas as pl
from jax.experimental.pallas import tpu as pltpu


# ----------------------------- kernel ---------------------------------------


def _invconv_matmul_kernel(x_ref, w_ref, o_ref):
    # x_ref/o_ref: (B_tile, C, T)   w_ref: (C, C)
    w = w_ref[...]
    for b in range(x_ref.shape[0]):   # static unroll; B_tile is small (<=32)
        o_ref[b] = jnp.dot(
            w, x_ref[b], preferred_element_type=jnp.float32
        ).astype(o_ref.dtype)


# ----------------------------- tiling ----------------------------------------


def _vmem_limit_bytes():
    """Generation-aware scoped-VMEM limit (≈ half of physical, capped)."""
    try:
        cap = pltpu.get_tpu_info().vmem_capacity_bytes
    except Exception:
        cap = 64 << 20            # conservative: v7x per-TensorCore VMEM
    return int(min(cap // 2, 96 << 20))


def _choose_tiling(N, C, HW, itemsize, vmem_limit, *,
                   max_lane_tile=32768, max_batch_tile=32,
                   min_step_bytes=1 << 19, target_steps=8):
    """Pick (B_tile, T, HW_pad).

    Per-step VMEM ≈ 2 double-buffered copies of the x block + 2 of the out block
    (+ the tiny resident weight), so each block gets ~vmem_limit/4 bytes.
    """
    weight_bytes = 2 * C * C * 4
    block_budget = max((vmem_limit - weight_bytes - (2 << 20)) // 4,
                       C * 128 * itemsize)

    slab_bytes = C * HW * itemsize                       # one image, full HW
    if slab_bytes <= block_budget:
        # --- batch-tiled path: T = full HW (ok even if HW % 128 != 0),
        #     no padding, one contiguous DMA per step. ---
        fitting = [d for d in range(min(N, max_batch_tile), 0, -1)
                   if N % d == 0 and d * slab_bytes <= block_budget]
        b_tile = fitting[0] if fitting else 1
        for d in fitting[1:]:
            # Expose more grid steps (v7x 2-TC split + pipelining) as long as
            # each step still moves a reasonable amount of data.
            if N // b_tile >= target_steps or d * slab_bytes < min_step_bytes:
                break
            b_tile = d
        return b_tile, HW, HW

    # --- lane-tiled path: B_tile = 1, lane-dense multiples of 128 ---
    hw128 = ((HW + 127) // 128) * 128
    max_lanes = min(block_budget // (C * itemsize), max_lane_tile, hw128)
    max_lanes = max(128, (max_lanes // 128) * 128)
    m = hw128 // 128
    T = 128
    for d in range(max_lanes // 128, 0, -1):             # largest exact divisor
        if m % d == 0:
            T = 128 * d
            break
    hw_pad = hw128
    if T < min(2048, max_lanes):
        # No decent exact divisor: accept one pad/slice round-trip rather than
        # running 128-lane steps where per-step overhead dominates.
        T = min(max_lanes, 8192)
        hw_pad = ((HW + T - 1) // T) * T
    return 1, T, hw_pad


# ----------------------------- wrapper ---------------------------------------


def calc_weight(params):
    """W = P @ (L*l_mask + I) @ (U*u_mask + diag(sign(s)*exp(log|s|))). (C, C)"""
    l_term = params["w_l"] * params["l_mask"] + params["eye"]
    u_term = params["w_u"] * params["u_mask"] + jnp.diag(
        params["s_sign"][0] * jnp.exp(params["w_s"][0])
    )
    return params["w_p"] @ l_term @ u_term


def invconv2d_lu_forward(x_nchw, params, *, stream_dtype=None):
    """Forward pass of InvConv2dLU. Input NCHW. Returns (out_nchw, logdet).

    stream_dtype=jnp.bfloat16 halves HBM traffic (f32 accumulation on the MXU);
    default keeps the input dtype (f32) to preserve the module's numerics.
    """
    N, C, H, W = x_nchw.shape
    HW = H * W

    # --- hoisted tiny, batch-independent work ---
    weight = calc_weight(params).astype(jnp.float32)            # (C, C)
    # NOTE: weight uses un-clamped exp(w_s); only the logdet clamps w_s — this
    # matches the PyTorch module exactly (clamp applied to the logdet sum only).
    logdet = H * W * jnp.sum(jnp.clip(params["w_s"], -20.0, 20.0))

    sdt = jnp.dtype(stream_dtype) if stream_dtype is not None else x_nchw.dtype
    itemsize = jnp.dtype(sdt).itemsize
    vmem_limit = _vmem_limit_bytes()
    B_tile, T, HW_pad = _choose_tiling(N, C, HW, itemsize, vmem_limit)

    x = x_nchw.reshape(N, C, HW)                                # free (contiguous)
    if x.dtype != sdt:
        x = x.astype(sdt)
    w_stream = weight.astype(sdt)
    if HW_pad != HW:
        # Only hit when HW is not a multiple of 128 AND too big for the batch
        # path, or when no exact lane divisor exists.
        # TODO(synk): an in-kernel masked tail store would remove this extra
        # HBM round-trip entirely.
        x = jnp.pad(x, ((0, 0), (0, 0), (0, HW_pad - HW)))

    grid = (N // B_tile, HW_pad // T)
    cost = pl.CostEstimate(
        flops=2 * N * C * C * HW_pad,
        transcendentals=0,
        bytes_accessed=itemsize * (N * C * HW_pad + C * C) + 4 * N * C * HW_pad,
    )

    out = pl.pallas_call(
        _invconv_matmul_kernel,
        out_shape=jax.ShapeDtypeStruct((N, C, HW_pad), jnp.float32),
        grid_spec=pl.GridSpec(
            grid=grid,
            in_specs=[
                pl.BlockSpec((B_tile, C, T), lambda n, t: (n, 0, t)),   # x block
                pl.BlockSpec((C, C), lambda n, t: (0, 0)),              # resident W
            ],
            out_specs=pl.BlockSpec((B_tile, C, T), lambda n, t: (n, 0, t)),
        ),
        compiler_params=pltpu.CompilerParams(
            dimension_semantics=("parallel", "parallel"),
            vmem_limit_bytes=vmem_limit,
        ),
        cost_estimate=cost,
    )(x, w_stream)

    if HW_pad != HW:
        out = out[:, :, :HW]
    return out.reshape(N, C, H, W), logdet


# ------------------------ param init & reference ------------------------------


def init_params(key, in_channel):
    """Deterministic re-implementation of InvConv2dLU.__init__ (QR + LU of a
    random matrix), all in JAX (no checkpoint load)."""
    w = jax.random.normal(key, (in_channel, in_channel), dtype=jnp.float32)
    q, _ = jnp.linalg.qr(w)
    p, l, u = jax.scipy.linalg.lu(q.astype(jnp.float32))
    w_s = jnp.diag(u)                          # signed diagonal of U
    w_u = jnp.triu(u, 1)
    u_mask = jnp.triu(jnp.ones_like(w_u), 1)
    l_mask = u_mask.T
    return dict(
        w_p=p.astype(jnp.float32),
        w_l=l.astype(jnp.float32),
        w_u=w_u.astype(jnp.float32),
        w_s=jnp.log(jnp.abs(w_s)).reshape(1, -1).astype(jnp.float32),
        s_sign=jnp.sign(w_s).reshape(1, -1).astype(jnp.float32),
        l_mask=l_mask.astype(jnp.float32),
        u_mask=u_mask.astype(jnp.float32),
        eye=jnp.eye(in_channel, dtype=jnp.float32),
    )


def reference_forward(x_nchw, params):
    """Pure-JAX reference mirroring the PyTorch forward exactly."""
    weight = params["w_p"] @ (params["w_l"] * params["l_mask"] + params["eye"]) @ (
        params["w_u"] * params["u_mask"]
        + jnp.diag(params["s_sign"][0] * jnp.exp(params["w_s"][0]))
    )
    out = jnp.einsum("oc,nchw->nohw", weight, x_nchw)          # 1x1 conv, NCHW
    _, _, h, w = x_nchw.shape
    logdet = h * w * jnp.sum(jnp.clip(params["w_s"], -20.0, 20.0))
    return out, logdet


if __name__ == "__main__":
    key = jax.random.PRNGKey(0)
    k_param, k_x = jax.random.split(key)

    N, C, H, W = 2, 4, 16, 16
    params = init_params(k_param, C)
    x = jax.random.normal(k_x, (N, C, H, W), dtype=jnp.float32)

    out, logdet = invconv2d_lu_forward(x, params)
    out = jax.block_until_ready(out)
    logdet = jax.block_until_ready(logdet)

    # Mirror the module's NaN/Inf warning (host-side print only).
    if bool(jnp.isnan(logdet)) or bool(jnp.isinf(logdet)):
        print(f"Warning: NaN or Inf detected in logdet: {logdet}")

    out_ref, logdet_ref = reference_forward(x, params)
    assert jnp.allclose(out, out_ref, atol=1e-4, rtol=1e-4), "conv output mismatch"
    assert jnp.allclose(logdet, logdet_ref, atol=1e-4, rtol=1e-4), "logdet mismatch"

    print("KERNEL_OK")
</pallas_src>

<mosaic_0001>
module attributes {stable_mosaic.version = 11 : i64} {
  func.func @_invconv_matmul_kernel(%arg0: i32, %arg1: i32, %arg2: memref<2x4x256xf32, #tpu.memory_space<vmem>>, %arg3: memref<4x4xf32, #tpu.memory_space<vmem>>, %arg4: memref<2x4x256xf32, #tpu.memory_space<vmem>>) attributes {dimension_semantics = [#tpu.dimension_semantics<parallel>, #tpu.dimension_semantics<parallel>], iteration_bounds = array<i64: 1, 1>, scalar_prefetch = 0 : i64, scratch_operands = 0 : i64, tpu.core_type = #tpu.core_type<tc>, window_params = [{transform_indices = @transform_0, window_bounds = array<i64: 2, 4, 256>}, {pipeline_mode = #tpu.pipeline_mode<synchronous>, transform_indices = @transform_1, window_bounds = array<i64: 4, 4>}, {transform_indices = @transform_2, window_bounds = array<i64: 2, 4, 256>}]} {
    %c0 = arith.constant 0 : index
    %c0_0 = arith.constant 0 : index
    %0 = vector.load %arg3[%c0, %c0_0] : memref<4x4xf32, #tpu.memory_space<vmem>>, vector<4x4xf32>
    %c0_1 = arith.constant 0 : index
    %c0_2 = arith.constant 0 : index
    %c0_3 = arith.constant 0 : index
    %1 = vector.load %arg2[%c0_1, %c0_2, %c0_3] : memref<2x4x256xf32, #tpu.memory_space<vmem>>, vector<1x4x256xf32>
    %2 = vector.shape_cast %1 : vector<1x4x256xf32> to vector<4x256xf32>
    %cst = arith.constant dense<0.000000e+00> : vector<4x256xf32>
    %3 = tpu.matmul %0, %2, %cst {dimension_numbers = #tpu.dot_dimension_numbers<[1], [0], [0], [1], [0, 0, 1, 1], [], []>} : vector<4x4xf32>, vector<4x256xf32>, vector<4x256xf32> -> vector<4x256xf32>
    %c0_4 = arith.constant 0 : index
    %c0_5 = arith.constant 0 : index
    %c0_6 = arith.constant 0 : index
    %4 = vector.load %arg4[%c0_4, %c0_5, %c0_6] : memref<2x4x256xf32, #tpu.memory_space<vmem>>, vector<1x4x256xf32>
    %5 = vector.shape_cast %4 : vector<1x4x256xf32> to vector<4x256xf32>
    %6 = vector.shape_cast %3 : vector<4x256xf32> to vector<1x4x256xf32>
    tpu.vector_store %arg4[%c0_4, %c0_5, %c0_6], %6 {strides = array<i32>} : memref<2x4x256xf32, #tpu.memory_space<vmem>>, vector<1x4x256xf32>,
    %c1 = arith.constant 1 : index
    %c0_7 = arith.constant 0 : index
    %c0_8 = arith.constant 0 : index
    %7 = vector.load %arg2[%c1, %c0_7, %c0_8] : memref<2x4x256xf32, #tpu.memory_space<vmem>>, vector<1x4x256xf32>
    %8 = vector.shape_cast %7 : vector<1x4x256xf32> to vector<4x256xf32>
    %cst_9 = arith.constant dense<0.000000e+00> : vector<4x256xf32>
    %9 = tpu.matmul %0, %8, %cst_9 {dimension_numbers = #tpu.dot_dimension_numbers<[1], [0], [0], [1], [0, 0, 1, 1], [], []>} : vector<4x4xf32>, vector<4x256xf32>, vector<4x256xf32> -> vector<4x256xf32>
    %c1_10 = arith.constant 1 : index
    %c0_11 = arith.constant 0 : index
    %c0_12 = arith.constant 0 : index
    %10 = vector.load %arg4[%c1_10, %c0_11, %c0_12] : memref<2x4x256xf32, #tpu.memory_space<vmem>>, vector<1x4x256xf32>
    %11 = vector.shape_cast %10 : vector<1x4x256xf32> to vector<4x256xf32>
    %12 = vector.shape_cast %9 : vector<4x256xf32> to vector<1x4x256xf32>
    tpu.vector_store %arg4[%c1_10, %c0_11, %c0_12], %12 {strides = array<i32>} : memref<2x4x256xf32, #tpu.memory_space<vmem>>, vector<1x4x256xf32>,
    return
  }
  func.func @transform_0(%arg0: i32, %arg1: i32) -> (i32, i32, i32) {
    %c0_i32 = arith.constant 0 : i32
    %c0_i32_0 = arith.constant 0 : i32
    return %arg0, %c0_i32, %arg1 : i32, i32, i32
  }
  func.func @transform_1(%arg0: i32, %arg1: i32) -> (i32, i32) {
    %c0_i32 = arith.constant 0 : i32
    %c0_i32_0 = arith.constant 0 : i32
    %c0_i32_1 = arith.constant 0 : i32
    return %c0_i32, %c0_i32_0 : i32, i32
  }
  func.func @transform_2(%arg0: i32, %arg1: i32) -> (i32, i32, i32) {
    %c0_i32 = arith.constant 0 : i32
    %c0_i32_0 = arith.constant 0 : i32
    return %arg0, %c0_i32, %arg1 : i32, i32, i32
  }
}

</mosaic_0001>

<llo_original>
// kernel: tpu_custom_call.1
$region0: #{tpu_custom_call.1}
  #allocation0 [shape = 'u32[]', space=smem, size = 0x4, offset = 0x4, fixed_abs, tag = 'smem constant byte address 0x4 - core index']
  #allocation1 [shape = 'u32[72,128]{1,0:T(1,128)}', space=vmem, size = 0x9000, scoped, tag = 'internal scratch']
  %s0 = inlined_call_operand.hbm [shape: f32[2,4,256], index: 0, kind: input, shape index: {}]
  %s1 = inlined_call_operand.hbm [shape: f32[4,4], index: 1, kind: input, shape index: {}]
  %s2 = inlined_call_operand.hbm [shape: f32[2,4,256], index: 2, kind: output, shape index: {}]
  %s3 = sld [smem:[#allocation0]]
  $region26: #{tpu_custom_call.1} parent=0
    _
  %s5 = ssub.s32 1, %s3
  %s6 = scalar_select 0, %s5, %s3
  $region1: #{tpu_custom_call.1} parent=0
    #allocation2 [shape = 'u8[8192]{0}', space=vmem, size = 0x2000, scoped, tag = 'input window, operand 0, single buffered']
    #allocation3 [shape = 's32[1]{0}', space=sflag, size = 0x4, scoped, tag = 'scoped memory for tpu_custom_call.1']
    #allocation4 [shape = 's32[1]{0}', space=sflag, size = 0x4, scoped, tag = 'scoped memory for tpu_custom_call.1']
    #allocation5 [shape = 'u8[2048]{0}', space=vmem, size = 0x800, scoped, tag = 'input window, operand 1, single buffered']
    #allocation6 [shape = 's32[1]{0}', space=sflag, size = 0x4, scoped, tag = 'scoped memory for tpu_custom_call.1']
    #allocation7 [shape = 'u8[8192]{0}', space=vmem, size = 0x2000, scoped, tag = 'output window, operand 0, single buffered']
    %7 = vsyncpa [#allocation3], 0
    %8 = vsyncpa [#allocation6], 0
    %9 = vsyncpa [#allocation4], 0
    // Predicated region
    $region2: #{tpu_custom_call.1} parent=1 // pred_check
      _
    $region3: #{tpu_custom_call.1} parent=1 // pred_check_branch
      %11 = sbr.rel (0) target = $region5
    $region4: #{tpu_custom_call.1} parent=1 // pred_region
      %13 = vsyncadd [#allocation3], 0
      %s14 = sshll.u32 %s0, 4
      %s15 = int_to_ptr.hbm [resolvable:$true] %s14
      %s16 = sshll.u32 [#allocation2], 4
      %s17 = int_to_ptr.vmem [resolvable:$true] %s16
      %22 = dma.hbm_to_vmem [thread:$0]  %s15, 256, %s17, [#allocation3], 128, 128, 8
    $region5: #{tpu_custom_call.1} parent=1 // pred_fallthru
      _
    // Predicated region
    $region6: #{tpu_custom_call.1} parent=1 // pred_check
      _
    $region7: #{tpu_custom_call.1} parent=1 // pred_check_branch
      %24 = sbr.rel (0) target = $region9
    $region8: #{tpu_custom_call.1} parent=1 // pred_region
      %26 = vsyncadd [#allocation6], 0
      %s28 = sshll.u32 %s1, 4
      %s29 = int_to_ptr.hbm [resolvable:$true] %s28
      %s30 = sshll.u32 [#allocation5], 4
      %s31 = int_to_ptr.vmem [resolvable:$true] %s30
      %33 = dma.hbm_to_vmem [thread:$0]  %s29, 64, %s31, [#allocation6]
    $region9: #{tpu_custom_call.1} parent=1 // pred_fallthru
      _
    // Predicated region
    $region10: #{tpu_custom_call.1} parent=1 // pred_check
      _
    $region11: #{tpu_custom_call.1} parent=1 // pred_check_branch
      %35 = sbr.rel (0) target = $region13
    $region12: #{tpu_custom_call.1} parent=1 // pred_region
      %37 = dma.done [#allocation3], 256
    $region13: #{tpu_custom_call.1} parent=1 // pred_fallthru
      _
    // Predicated region
    $region14: #{tpu_custom_call.1} parent=1 // pred_check
      _
    $region15: #{tpu_custom_call.1} parent=1 // pred_check_branch
      %39 = sbr.rel (0) target = $region17
    $region16: #{tpu_custom_call.1} parent=1 // pred_region
      %41 = dma.done [#allocation6], 64
    $region17: #{tpu_custom_call.1} parent=1 // pred_fallthru
      _
    %v42 = vld [vmem:[#allocation5] sm:$0xf]
    %v43 = vld [vmem:[#allocation2] sm:$0xff]
    %45 = vst [vmem:[#allocation1] ss:$2 sm:$0xff] %v43
    %v46 = vld.sshfl [vmem:[#allocation1] sm:$0xff pattern:$0x75316420]
    %v47 = vld.sshfl [vmem:[#allocation1 + $0x8] sm:$0xff pattern:$0x75316420]
    %vm48 = vcmask 31744
    %v50 = vsel %vm48, %v42, 0
    %vm52 = vcmask 1043456
    %v53 = vsel %vm52, %v46, 0
    %v55 = vsel %vm52, %v47, 0
    %57 = vmatpush.msra.mxu0 0.0
    %58 = vmatpush.msra.mxu0 0.0
    %59 = vmatpush.msra.mxu0 0.0
    %60 = vmatpush.msra.mxu0 0.0
    %61 = vmatpush.msra.mxu0 0.0
    %62 = vmatpush.msra.mxu0 0.0
    %63 = vmatpush.msra.mxu0 0.0
    %64 = vmatpush.msra.mxu0 0.0
    %65 = vmatpush.msra.mxu0 0.0
    %66 = vmatpush.msra.mxu0 0.0
    %67 = vmatpush.msra.mxu0 0.0
    %68 = vmatpush.msra.mxu0 0.0
    %69 = vmatpush.msra.mxu0 0.0
    %70 = vmatpush.msra.mxu0 0.0
    %71 = vmatpush.msra.mxu0 0.0
    %72 = vmatpush.msra.mxu0 %v53
    %73 = vmatmul.f32.gmra.mxu0 %v50
    %v74 = vpop.f32.mrf.mxu0
    %v75 = vadd.f32 0.0, %v74
    %76 = vdwg.mxu0
    %77 = vmatpush.msra.mxu0 0.0
    %78 = vmatpush.msra.mxu0 0.0
    %79 = vmatpush.msra.mxu0 0.0
    %80 = vmatpush.msra.mxu0 0.0
    %81 = vmatpush.msra.mxu0 0.0
    %82 = vmatpush.msra.mxu0 0.0
    %83 = vmatpush.msra.mxu0 0.0
    %84 = vmatpush.msra.mxu0 0.0
    %85 = vmatpush.msra.mxu0 0.0
    %86 = vmatpush.msra.mxu0 0.0
    %87 = vmatpush.msra.mxu0 0.0
    %88 = vmatpush.msra.mxu0 0.0
    %89 = vmatpush.msra.mxu0 0.0
    %90 = vmatpush.msra.mxu0 0.0
    %91 = vmatpush.msra.mxu0 0.0
    %92 = vmatpush.msra.mxu0 %v55
    %93 = vmatmul.f32.gmra.mxu0 %v50
    %v94 = vpop.f32.mrf.mxu0
    %v95 = vadd.f32 0.0, %v94
    %96 = vdwg.mxu0
    %v99 = vrot.slane %v95, 4
    %v100 = vsel %vm52, %v75, %v99
    %102 = vst [vmem:[#allocation7] sm:$0xff] %v100
    %s103 = scalar_lea.vmem [#allocation2], 8
    %v104 = vld [vmem:[%s103] sm:$0xff]
    %106 = vst [vmem:[#allocation1] ss:$2 sm:$0xff] %v104
    %v107 = vld.sshfl [vmem:[#allocation1] sm:$0xff pattern:$0x75316420]
    %v108 = vld.sshfl [vmem:[#allocation1 + $0x8] sm:$0xff pattern:$0x75316420]
    %v109 = vsel %vm52, %v107, 0
    %v111 = vsel %vm52, %v108, 0
    %113 = vmatpush.msra.mxu0 0.0
    %114 = vmatpush.msra.mxu0 0.0
    %115 = vmatpush.msra.mxu0 0.0
    %116 = vmatpush.msra.mxu0 0.0
    %117 = vmatpush.msra.mxu0 0.0
    %118 = vmatpush.msra.mxu0 0.0
    %119 = vmatpush.msra.mxu0 0.0
    %120 = vmatpush.msra.mxu0 0.0
    %121 = vmatpush.msra.mxu0 0.0
    %122 = vmatpush.msra.mxu0 0.0
    %123 = vmatpush.msra.mxu0 0.0
    %124 = vmatpush.msra.mxu0 0.0
    %125 = vmatpush.msra.mxu0 0.0
    %126 = vmatpush.msra.mxu0 0.0
    %127 = vmatpush.msra.mxu0 0.0
    %128 = vmatpush.msra.mxu0 %v109
    %129 = vmatmul.f32.gmra.mxu0 %v50
    %v130 = vpop.f32.mrf.mxu0
    %v131 = vadd.f32 0.0, %v130
    %132 = vdwg.mxu0
    %133 = vmatpush.msra.mxu0 0.0
    %134 = vmatpush.msra.mxu0 0.0
    %135 = vmatpush.msra.mxu0 0.0
    %136 = vmatpush.msra.mxu0 0.0
    %137 = vmatpush.msra.mxu0 0.0
    %138 = vmatpush.msra.mxu0 0.0
    %139 = vmatpush.msra.mxu0 0.0
    %140 = vmatpush.msra.mxu0 0.0
    %141 = vmatpush.msra.mxu0 0.0
    %142 = vmatpush.msra.mxu0 0.0
    %143 = vmatpush.msra.mxu0 0.0
    %144 = vmatpush.msra.mxu0 0.0
    %145 = vmatpush.msra.mxu0 0.0
    %146 = vmatpush.msra.mxu0 0.0
    %147 = vmatpush.msra.mxu0 0.0
    %148 = vmatpush.msra.mxu0 %v111
    %149 = vmatmul.f32.gmra.mxu0 %v50
    %v150 = vpop.f32.mrf.mxu0
    %v151 = vadd.f32 0.0, %v150
    %152 = vdwg.mxu0
    %v155 = vrot.slane %v151, 4
    %v156 = vsel %vm52, %v131, %v155
    %s158 = scalar_lea.vmem [#allocation7], 8
    %159 = vst [vmem:[%s158] sm:$0xff] %v156
    // Predicated region
    $region18: #{tpu_custom_call.1} parent=1 // pred_check
      _
    $region19: #{tpu_custom_call.1} parent=1 // pred_check_branch
      %161 = sbr.rel (0) target = $region21
    $region20: #{tpu_custom_call.1} parent=1 // pred_region
      %163 = vsyncadd [#allocation4], 0
      %s164 = sshll.u32 [#allocation7], 4
      %s165 = int_to_ptr.vmem [resolvable:$true] %s164
      %s166 = sshll.u32 %s2, 4
      %s167 = int_to_ptr.hbm [resolvable:$true] %s166
      %172 = dma.vmem_to_hbm [thread:$0]  %s165, 256, %s167, [#allocation4], 128, 128, 8
    $region21: #{tpu_custom_call.1} parent=1 // pred_fallthru
      _
    // Predicated region
    $region22: #{tpu_custom_call.1} parent=1 // pred_check
      _
    $region23: #{tpu_custom_call.1} parent=1 // pred_check_branch
      %174 = sbr.rel (0) target = $region25
    $region24: #{tpu_custom_call.1} parent=1 // pred_region
      %176 = dma.done [#allocation4], 256
    $region25: #{tpu_custom_call.1} parent=1 // pred_fallthru
      _
    %177 = vsyncpa [#allocation3], 1
    %178 = vsyncpa [#allocation6], 1
    %179 = vsyncpa [#allocation4], 1

</llo_original>
